<compile_context>
chip_gen: v5e
topology: v5e:2x2
jax: 0.10.0
libtpu: 0.0.40
codegen_flags: <defaults>
</compile_context>

<pallas_src>
from functools import lru_cache

import jax
import jax.numpy as jnp
from jax import lax
from jax.experimental import pallas as pl
from jax.experimental.pallas import tpu as pltpu


def _round_up(n, m):
    return ((n + m - 1) // m) * m


@lru_cache(maxsize=1)
def _vmem_limit_bytes():
    """~75% of physical VMEM (v7x: 48 MiB, v5e/v6e: 96 MiB), conservative fallback 48 MiB."""
    cap = None
    try:
        cap = int(getattr(pltpu.get_tpu_info(), "vmem_capacity_bytes", 0)) or None
    except Exception:
        cap = None
    if not cap:
        cap = 64 * 1024 * 1024
    return min(cap * 3 // 4, 100 * 1024 * 1024)


def _row_tiling(n, target=512):
    """Row tile (multiple of 8, <= target) chosen so the parallel grid has >=2 steps (megacore)."""
    half = _round_up(max((n + 1) // 2, 1), 8)
    tile = max(8, min(target, half))
    n_pad = _round_up(n, tile)
    return tile, n_pad


def _pad_rows(x2d, n_pad):
    n = x2d.shape[0]
    if n_pad == n:
        return x2d
    return jnp.pad(x2d, ((0, n_pad - n), (0, 0)))


# ----------------------------------------------------------------------------
# Spatial filter kernel (MLPSpatialFilter forward, 'value_activation' output).
# Weights are pre-transposed (in, out) and stored bf16; fc21/fc23 are fused.
# ----------------------------------------------------------------------------
def make_spatial_kernel(num_hidden):
    def kernel(x_ref,
               w11_ref, b11_ref, w12_ref, b12_ref,
               w2123_ref, b2123_ref, w22_ref, b22_ref,
               wv_ref, bv_ref,
               out_ref):
        x = x_ref[...]                                           # (tile, S) f32

        def lin(h, w_ref, b_ref):
            # bf16 operands on the MXU, f32 accumulation, f32 bias add.
            return (jnp.dot(h.astype(jnp.bfloat16), w_ref[...],
                            preferred_element_type=jnp.float32) + b_ref[...])

        relu = lambda v: jnp.maximum(v, 0.0)

        # x1 = relu(fc12(relu(fc11(x))) + x)
        h = relu(lin(x, w11_ref, b11_ref))
        x1 = relu(lin(h, w12_ref, b12_ref) + x)
        # x2 = relu(fc22(relu(fc21(x1))) + fc23(x1))   (fc21/fc23 fused into one matmul;
        # the split below is on in-vreg values, off the serial critical path)
        z = lin(x1, w2123_ref, b2123_ref)                        # (tile, 2H)
        h2 = relu(z[:, :num_hidden])
        x2 = relu(lin(h2, w22_ref, b22_ref) + z[:, num_hidden:])
        # out['value_activation'] = relu(value(x2))
        out_ref[...] = relu(lin(x2, wv_ref, bv_ref))

    return kernel


def spatial_forward(x2d, sp):
    n, s = x2d.shape
    hidden = sp['wv'].shape[1]
    tile, n_pad = _row_tiling(n)
    xp = _pad_rows(x2d, n_pad)

    weights = [sp['w11'], sp['b11'], sp['w12'], sp['b12'],
               sp['w2123'], sp['b2123'], sp['w22'], sp['b22'],
               sp['wv'], sp['bv']]
    in_specs = ([pl.BlockSpec((tile, s), lambda i: (i, 0))] +
                [pl.BlockSpec(w.shape, lambda i: (0, 0)) for w in weights])

    out = pl.pallas_call(
        make_spatial_kernel(hidden),
        out_shape=jax.ShapeDtypeStruct((n_pad, hidden), jnp.float32),
        grid=(n_pad // tile,),
        in_specs=in_specs,
        out_specs=pl.BlockSpec((tile, hidden), lambda i: (i, 0)),
        compiler_params=pltpu.CompilerParams(
            dimension_semantics=("parallel",),
            vmem_limit_bytes=_vmem_limit_bytes()),
    )(xp, *weights)
    return out if n_pad == n else out[:n]


# ----------------------------------------------------------------------------
# LSTM layer kernel: time-chunked recurrence with the input-to-hidden projection
# fused in.  Rows are flat time-major: row = bb*(T_pad*Bh) + t*Bh + b.
#   grid = (batch_blocks "parallel", time_chunks "arbitrary")
#   x block   : (Tc*Bh, Din)
#   out block : (Tc*Bh, Hp)      Hp = round_up(H, 128)  -> lane-dense stores
#   scratch   : xp (Tc*Bh, 4Hp) f32, h (Bh, Hp) f32, c (Bh, Hp) f32
# ----------------------------------------------------------------------------
def make_lstm_layer_kernel(t_chunk, bh, hp):
    def kernel(x_ref, wih_ref, whh_ref, b_ref, out_ref, xp_scr, h_scr, c_scr):
        # h/c carry across time chunks; re-initialized at the first chunk of each batch block.
        # NOTE: correctness requires the time grid axis to stay sequential ("arbitrary");
        # only the batch-block axis may ever be marked parallel / megacore-split.
        @pl.when(pl.program_id(1) == 0)
        def _():
            h_scr[...] = jnp.zeros_like(h_scr)
            c_scr[...] = jnp.zeros_like(c_scr)

        # One MXU matmul for the whole chunk's input-to-hidden projection (bf16 -> f32 acc).
        x = x_ref[...].astype(jnp.bfloat16)                      # (Tc*Bh, Din)
        xp_scr[...] = (jnp.dot(x, wih_ref[...],
                               preferred_element_type=jnp.float32) + b_ref[...])

        whh = whh_ref[...]                                       # (Hp, 4Hp) bf16, resident

        def step(t, carry):
            h, c = carry
            r0 = pl.multiple_of(t * bh, bh)                      # sublane-aligned row offset
            gates = (xp_scr[pl.ds(r0, bh), :] +
                     jnp.dot(h.astype(jnp.bfloat16), whh,
                             preferred_element_type=jnp.float32))
            # PyTorch gate order: i, f, g, o.  hp is a multiple of 128 -> lane-aligned slices.
            i = jax.nn.sigmoid(gates[:, 0 * hp:1 * hp])
            f = jax.nn.sigmoid(gates[:, 1 * hp:2 * hp])
            g = jnp.tanh(gates[:, 2 * hp:3 * hp])
            o = jax.nn.sigmoid(gates[:, 3 * hp:4 * hp])
            c_new = f * c + i * g
            h_new = o * jnp.tanh(c_new)
            out_ref[pl.ds(r0, bh), :] = h_new
            return h_new, c_new

        h_fin, c_fin = lax.fori_loop(0, t_chunk, step,
                                     (h_scr[...], c_scr[...]), unroll=True)
        h_scr[...] = h_fin
        c_scr[...] = c_fin

    return kernel


def lstm_layer(rows, wih, whh, b, *, t_chunk, bh, n_tc, nb):
    n_rows, din = rows.shape
    hp4 = wih.shape[1]
    hp = hp4 // 4
    rows_per_block = t_chunk * bh

    return pl.pallas_call(
        make_lstm_layer_kernel(t_chunk, bh, hp),
        out_shape=jax.ShapeDtypeStruct((n_rows, hp), jnp.float32),
        grid=(nb, n_tc),
        in_specs=[pl.BlockSpec((rows_per_block, din), lambda bb, tt: (bb * n_tc + tt, 0)),
                  pl.BlockSpec(wih.shape, lambda bb, tt: (0, 0)),
                  pl.BlockSpec(whh.shape, lambda bb, tt: (0, 0)),
                  pl.BlockSpec(b.shape, lambda bb, tt: (0, 0))],
        out_specs=pl.BlockSpec((rows_per_block, hp), lambda bb, tt: (bb * n_tc + tt, 0)),
        scratch_shapes=[pltpu.VMEM((rows_per_block, hp4), jnp.float32),
                        pltpu.VMEM((bh, hp), jnp.float32),
                        pltpu.VMEM((bh, hp), jnp.float32)],
        compiler_params=pltpu.CompilerParams(
            dimension_semantics=("parallel", "arbitrary"),
            vmem_limit_bytes=_vmem_limit_bytes()),
    )(rows, wih, whh, b)


def lstm_stack_forward(fc2, layers, num_source):
    """fc2: (B, T, H_sp) batch-major -> returns (B, T, num_source)."""
    B, T, hsp = fc2.shape
    b_pad = _round_up(max(B, 8), 8)                    # sublane-aligned per-step row groups
    t_chunk = T if T <= 32 else 16
    t_pad = _round_up(T, t_chunk)
    nb = 2 if (b_pad >= 16 and b_pad % 16 == 0) else 1  # v7x: give the 2nd TC its own batch half
    bh = b_pad // nb
    n_tc = t_pad // t_chunk

    xb = fc2 if b_pad == B else jnp.pad(fc2, ((0, b_pad - B), (0, 0), (0, 0)))
    # One narrow (H_sp-wide) transpose into time-major layout; the 4H-wide xproj never hits HBM.
    xb = xb.reshape(nb, bh, T, hsp).transpose(0, 2, 1, 3)          # (NB, T, Bh, Hsp)
    if t_pad != T:
        xb = jnp.pad(xb, ((0, 0), (0, t_pad - T), (0, 0), (0, 0)))
    rows = xb.reshape(nb * t_pad * bh, hsp)

    for (wih, whh, b) in layers:
        rows = lstm_layer(rows, wih, whh, b, t_chunk=t_chunk, bh=bh, n_tc=n_tc, nb=nb)

    hp = rows.shape[1]
    y = rows.reshape(nb, t_pad, bh, hp)[:, :T, :, :num_source]     # drop time & lane padding
    y = y.transpose(0, 2, 1, 3).reshape(b_pad, T, num_source)
    return y if b_pad == B else y[:B]


# ----------------------------------------------------------------------------
# Full TemporalInverseNet forward
# ----------------------------------------------------------------------------
def temporal_inverse_net_forward(x, params):
    B, T, S = x.shape
    fc2_flat = spatial_forward(x.reshape(B * T, S), params['spatial'])   # (B*T, H_sp)
    hsp = fc2_flat.shape[1]
    fc2 = fc2_flat.reshape(B, T, hsp)                                    # out['fc2'], batch-major
    last = lstm_stack_forward(fc2, params['lstm'], params['num_source'])
    return {'fc2': fc2, 'last': last}


# ----------------------------------------------------------------------------
# Deterministic parameter init (PyTorch-style uniform(-1/sqrt(fan), ...)).
# Kernel weights: pre-transposed (in, out), bf16, LSTM gates lane-padded to 128.
# Reference weights: same values, unpadded, f32.
# ----------------------------------------------------------------------------
def _linear_params(key, in_f, out_f):
    kw, kb = jax.random.split(key)
    lim = 1.0 / float(in_f) ** 0.5
    w = jax.random.uniform(kw, (in_f, out_f), jnp.float32, -lim, lim)
    b = jax.random.uniform(kb, (1, out_f), jnp.float32, -lim, lim)
    return w, b


def _pad_gate_cols(w, h, hp):
    """(in, 4*h) -> (in, 4*hp) with each gate's columns zero-padded to hp lanes."""
    if hp == h:
        return w
    in_f = w.shape[0]
    w4 = w.reshape(in_f, 4, h)
    w4 = jnp.pad(w4, ((0, 0), (0, 0), (0, hp - h)))
    return w4.reshape(in_f, 4 * hp)


def init_params(key, num_sensor, num_hidden, num_source, rnn_layer):
    keys = jax.random.split(key, 6 + rnn_layer)
    bf16 = jnp.bfloat16

    sp = {}
    w11, sp['b11'] = _linear_params(keys[0], num_sensor, num_sensor)
    w12, sp['b12'] = _linear_params(keys[1], num_sensor, num_sensor)
    w21, b21 = _linear_params(keys[2], num_sensor, num_hidden)
    w22, sp['b22'] = _linear_params(keys[3], num_hidden, num_hidden)
    w23, b23 = _linear_params(keys[4], num_sensor, num_hidden)
    wv, sp['bv'] = _linear_params(keys[5], num_hidden, num_hidden)
    sp['w11'] = w11.astype(bf16)
    sp['w12'] = w12.astype(bf16)
    sp['w22'] = w22.astype(bf16)
    sp['wv'] = wv.astype(bf16)
    # fuse fc21 and fc23 (same input) into one matmul
    sp['w2123'] = jnp.concatenate([w21, w23], axis=1).astype(bf16)   # (S, 2H)
    sp['b2123'] = jnp.concatenate([b21, b23], axis=1)                # (1, 2H), f32

    hp = _round_up(num_source, 128)
    lstm_k, lstm_ref_p = [], []
    lim = 1.0 / float(num_source) ** 0.5
    for l in range(rnn_layer):
        in_size = num_hidden if l == 0 else num_source
        ka, kb_, kc, kd = jax.random.split(keys[6 + l], 4)
        wih = jax.random.uniform(ka, (in_size, 4 * num_source), jnp.float32, -lim, lim).astype(bf16)
        whh = jax.random.uniform(kb_, (num_source, 4 * num_source), jnp.float32, -lim, lim).astype(bf16)
        b_ih = jax.random.uniform(kc, (4 * num_source,), jnp.float32, -lim, lim)
        b_hh = jax.random.uniform(kd, (4 * num_source,), jnp.float32, -lim, lim)
        b = (b_ih + b_hh).reshape(1, 4 * num_source)
        lstm_ref_p.append((wih.astype(jnp.float32), whh.astype(jnp.float32), b))

        # Lane-aligned kernel layout: per-gate hidden padded to hp (multiple of 128); the padded
        # rows/cols are zero so padded hidden lanes stay exactly 0 through the recurrence.
        wih_p = _pad_gate_cols(wih, num_source, hp)
        whh_p = _pad_gate_cols(whh, num_source, hp)
        if hp != num_source:
            whh_p = jnp.pad(whh_p, ((0, hp - num_source), (0, 0)))
            if l > 0:
                wih_p = jnp.pad(wih_p, ((0, hp - num_source), (0, 0)))
        b_p = _pad_gate_cols(b, num_source, hp)
        lstm_k.append((wih_p, whh_p, b_p))

    return {'spatial': sp, 'lstm': lstm_k, 'lstm_ref': lstm_ref_p, 'num_source': num_source}


# ----------------------------------------------------------------------------
# Pure-JAX f32 reference (sanity check)
# ----------------------------------------------------------------------------
def spatial_ref(x, sp):
    f32 = lambda a: a.astype(jnp.float32)
    relu = jax.nn.relu
    H = sp['w22'].shape[0]
    h = relu(x @ f32(sp['w11']) + sp['b11'])
    x1 = relu(h @ f32(sp['w12']) + sp['b12'] + x)
    z = x1 @ f32(sp['w2123']) + sp['b2123']
    h2 = relu(z[..., :H])
    x2 = relu(h2 @ f32(sp['w22']) + sp['b22'] + z[..., H:])
    return relu(x2 @ f32(sp['wv']) + sp['bv'])


def lstm_ref(x, layers):
    B, T, _ = x.shape
    out = x
    for (wih, whh, b) in layers:
        H = whh.shape[0]
        h = jnp.zeros((B, H), jnp.float32)
        c = jnp.zeros((B, H), jnp.float32)
        ys = []
        for t in range(T):
            gates = out[:, t, :] @ wih + h @ whh + b
            i = jax.nn.sigmoid(gates[:, :H])
            f = jax.nn.sigmoid(gates[:, H:2 * H])
            g = jnp.tanh(gates[:, 2 * H:3 * H])
            o = jax.nn.sigmoid(gates[:, 3 * H:])
            c = f * c + i * g
            h = o * jnp.tanh(c)
            ys.append(h)
        out = jnp.stack(ys, axis=1)
    return out


if __name__ == "__main__":
    key = jax.random.PRNGKey(0)
    B, T = 2, 8
    num_sensor, num_hidden, num_source, rnn_layer = 16, 32, 16, 2

    kx, kp = jax.random.split(key)
    x = jax.random.normal(kx, (B, T, num_sensor), jnp.float32)
    params = init_params(kp, num_sensor, num_hidden, num_source, rnn_layer)

    out = temporal_inverse_net_forward(x, params)
    jax.block_until_ready(out)

    # sanity check against f32 pure-JAX reference (tolerance loosened slightly for bf16 matmuls)
    ref_fc2 = spatial_ref(x, params['spatial'])
    ref_last = lstm_ref(ref_fc2, params['lstm_ref'])
    assert out['fc2'].shape == (B, T, num_hidden)
    assert out['last'].shape == (B, T, num_source)
    assert jnp.allclose(out['fc2'], ref_fc2, atol=2e-2, rtol=2e-2)
    assert jnp.allclose(out['last'], ref_last, atol=2e-2, rtol=2e-2)

    print("KERNEL_OK")
</pallas_src>

<mosaic_0001>
module attributes {stable_mosaic.version = 11 : i64} {
  func.func @kernel(%arg0: i32, %arg1: memref<8x16xf32, #tpu.memory_space<vmem>>, %arg2: memref<16x16xbf16, #tpu.memory_space<vmem>>, %arg3: memref<1x16xf32, #tpu.memory_space<vmem>>, %arg4: memref<16x16xbf16, #tpu.memory_space<vmem>>, %arg5: memref<1x16xf32, #tpu.memory_space<vmem>>, %arg6: memref<16x64xbf16, #tpu.memory_space<vmem>>, %arg7: memref<1x64xf32, #tpu.memory_space<vmem>>, %arg8: memref<32x32xbf16, #tpu.memory_space<vmem>>, %arg9: memref<1x32xf32, #tpu.memory_space<vmem>>, %arg10: memref<32x32xbf16, #tpu.memory_space<vmem>>, %arg11: memref<1x32xf32, #tpu.memory_space<vmem>>, %arg12: memref<8x32xf32, #tpu.memory_space<vmem>>) attributes {dimension_semantics = [#tpu.dimension_semantics<parallel>], iteration_bounds = array<i64: 2>, scalar_prefetch = 0 : i64, scratch_operands = 0 : i64, tpu.core_type = #tpu.core_type<tc>, window_params = [{transform_indices = @transform_0, window_bounds = array<i64: 8, 16>}, {pipeline_mode = #tpu.pipeline_mode<synchronous>, transform_indices = @transform_1, window_bounds = array<i64: 16, 16>}, {pipeline_mode = #tpu.pipeline_mode<synchronous>, transform_indices = @transform_2, window_bounds = array<i64: 1, 16>}, {pipeline_mode = #tpu.pipeline_mode<synchronous>, transform_indices = @transform_3, window_bounds = array<i64: 16, 16>}, {pipeline_mode = #tpu.pipeline_mode<synchronous>, transform_indices = @transform_4, window_bounds = array<i64: 1, 16>}, {pipeline_mode = #tpu.pipeline_mode<synchronous>, transform_indices = @transform_5, window_bounds = array<i64: 16, 64>}, {pipeline_mode = #tpu.pipeline_mode<synchronous>, transform_indices = @transform_6, window_bounds = array<i64: 1, 64>}, {pipeline_mode = #tpu.pipeline_mode<synchronous>, transform_indices = @transform_7, window_bounds = array<i64: 32, 32>}, {pipeline_mode = #tpu.pipeline_mode<synchronous>, transform_indices = @transform_8, window_bounds = array<i64: 1, 32>}, {pipeline_mode = #tpu.pipeline_mode<synchronous>, transform_indices = @transform_9, window_bounds = array<i64: 32, 32>}, {pipeline_mode = #tpu.pipeline_mode<synchronous>, transform_indices = @transform_10, window_bounds = array<i64: 1, 32>}, {transform_indices = @transform_11, window_bounds = array<i64: 8, 32>}]} {
    %c0 = arith.constant 0 : index
    %c0_0 = arith.constant 0 : index
    %0 = vector.load %arg1[%c0, %c0_0] : memref<8x16xf32, #tpu.memory_space<vmem>>, vector<8x16xf32>
    %1 = arith.truncf %0 : vector<8x16xf32> to vector<8x16xbf16>
    %c0_1 = arith.constant 0 : index
    %c0_2 = arith.constant 0 : index
    %2 = vector.load %arg2[%c0_1, %c0_2] : memref<16x16xbf16, #tpu.memory_space<vmem>>, vector<16x16xbf16>
    %cst = arith.constant dense<0.000000e+00> : vector<8x16xf32>
    %3 = tpu.matmul %1, %2, %cst {dimension_numbers = #tpu.dot_dimension_numbers<[1], [0], [0], [1], [0, 0, 1, 1], [], []>} : vector<8x16xbf16>, vector<16x16xbf16>, vector<8x16xf32> -> vector<8x16xf32>
    %c0_3 = arith.constant 0 : index
    %c0_4 = arith.constant 0 : index
    %4 = vector.load %arg3[%c0_3, %c0_4] : memref<1x16xf32, #tpu.memory_space<vmem>>, vector<1x16xf32>
    %5 = vector.broadcast %4 : vector<1x16xf32> to vector<8x16xf32>
    %6 = arith.addf %3, %5 : vector<8x16xf32>
    %cst_5 = arith.constant 0.000000e+00 : f32
    %7 = vector.broadcast %cst_5 : f32 to vector<8x16xf32>
    %8 = arith.maximumf %6, %7 : vector<8x16xf32>
    %9 = arith.truncf %8 : vector<8x16xf32> to vector<8x16xbf16>
    %c0_6 = arith.constant 0 : index
    %c0_7 = arith.constant 0 : index
    %10 = vector.load %arg4[%c0_6, %c0_7] : memref<16x16xbf16, #tpu.memory_space<vmem>>, vector<16x16xbf16>
    %cst_8 = arith.constant dense<0.000000e+00> : vector<8x16xf32>
    %11 = tpu.matmul %9, %10, %cst_8 {dimension_numbers = #tpu.dot_dimension_numbers<[1], [0], [0], [1], [0, 0, 1, 1], [], []>} : vector<8x16xbf16>, vector<16x16xbf16>, vector<8x16xf32> -> vector<8x16xf32>
    %c0_9 = arith.constant 0 : index
    %c0_10 = arith.constant 0 : index
    %12 = vector.load %arg5[%c0_9, %c0_10] : memref<1x16xf32, #tpu.memory_space<vmem>>, vector<1x16xf32>
    %13 = vector.broadcast %12 : vector<1x16xf32> to vector<8x16xf32>
    %14 = arith.addf %11, %13 : vector<8x16xf32>
    %15 = arith.addf %14, %0 : vector<8x16xf32>
    %cst_11 = arith.constant 0.000000e+00 : f32
    %16 = vector.broadcast %cst_11 : f32 to vector<8x16xf32>
    %17 = arith.maximumf %15, %16 : vector<8x16xf32>
    %18 = arith.truncf %17 : vector<8x16xf32> to vector<8x16xbf16>
    %c0_12 = arith.constant 0 : index
    %c0_13 = arith.constant 0 : index
    %19 = vector.load %arg6[%c0_12, %c0_13] : memref<16x64xbf16, #tpu.memory_space<vmem>>, vector<16x64xbf16>
    %cst_14 = arith.constant dense<0.000000e+00> : vector<8x64xf32>
    %20 = tpu.matmul %18, %19, %cst_14 {dimension_numbers = #tpu.dot_dimension_numbers<[1], [0], [0], [1], [0, 0, 1, 1], [], []>} : vector<8x16xbf16>, vector<16x64xbf16>, vector<8x64xf32> -> vector<8x64xf32>
    %c0_15 = arith.constant 0 : index
    %c0_16 = arith.constant 0 : index
    %21 = vector.load %arg7[%c0_15, %c0_16] : memref<1x64xf32, #tpu.memory_space<vmem>>, vector<1x64xf32>
    %22 = vector.broadcast %21 : vector<1x64xf32> to vector<8x64xf32>
    %23 = arith.addf %20, %22 : vector<8x64xf32>
    %24 = vector.extract_strided_slice %23 {offsets = [0, 0], sizes = [8, 32], strides = [1, 1]} : vector<8x64xf32> to vector<8x32xf32>
    %cst_17 = arith.constant 0.000000e+00 : f32
    %25 = vector.broadcast %cst_17 : f32 to vector<8x32xf32>
    %26 = arith.maximumf %24, %25 : vector<8x32xf32>
    %27 = arith.truncf %26 : vector<8x32xf32> to vector<8x32xbf16>
    %c0_18 = arith.constant 0 : index
    %c0_19 = arith.constant 0 : index
    %28 = vector.load %arg8[%c0_18, %c0_19] : memref<32x32xbf16, #tpu.memory_space<vmem>>, vector<32x32xbf16>
    %cst_20 = arith.constant dense<0.000000e+00> : vector<8x32xf32>
    %29 = tpu.matmul %27, %28, %cst_20 {dimension_numbers = #tpu.dot_dimension_numbers<[1], [0], [0], [1], [0, 0, 1, 1], [], []>} : vector<8x32xbf16>, vector<32x32xbf16>, vector<8x32xf32> -> vector<8x32xf32>
    %c0_21 = arith.constant 0 : index
    %c0_22 = arith.constant 0 : index
    %30 = vector.load %arg9[%c0_21, %c0_22] : memref<1x32xf32, #tpu.memory_space<vmem>>, vector<1x32xf32>
    %31 = vector.broadcast %30 : vector<1x32xf32> to vector<8x32xf32>
    %32 = arith.addf %29, %31 : vector<8x32xf32>
    %33 = vector.extract_strided_slice %23 {offsets = [0, 32], sizes = [8, 32], strides = [1, 1]} : vector<8x64xf32> to vector<8x32xf32>
    %34 = arith.addf %32, %33 : vector<8x32xf32>
    %cst_23 = arith.constant 0.000000e+00 : f32
    %35 = vector.broadcast %cst_23 : f32 to vector<8x32xf32>
    %36 = arith.maximumf %34, %35 : vector<8x32xf32>
    %37 = arith.truncf %36 : vector<8x32xf32> to vector<8x32xbf16>
    %c0_24 = arith.constant 0 : index
    %c0_25 = arith.constant 0 : index
    %38 = vector.load %arg10[%c0_24, %c0_25] : memref<32x32xbf16, #tpu.memory_space<vmem>>, vector<32x32xbf16>
    %cst_26 = arith.constant dense<0.000000e+00> : vector<8x32xf32>
    %39 = tpu.matmul %37, %38, %cst_26 {dimension_numbers = #tpu.dot_dimension_numbers<[1], [0], [0], [1], [0, 0, 1, 1], [], []>} : vector<8x32xbf16>, vector<32x32xbf16>, vector<8x32xf32> -> vector<8x32xf32>
    %c0_27 = arith.constant 0 : index
    %c0_28 = arith.constant 0 : index
    %40 = vector.load %arg11[%c0_27, %c0_28] : memref<1x32xf32, #tpu.memory_space<vmem>>, vector<1x32xf32>
    %41 = vector.broadcast %40 : vector<1x32xf32> to vector<8x32xf32>
    %42 = arith.addf %39, %41 : vector<8x32xf32>
    %cst_29 = arith.constant 0.000000e+00 : f32
    %43 = vector.broadcast %cst_29 : f32 to vector<8x32xf32>
    %44 = arith.maximumf %42, %43 : vector<8x32xf32>
    %c0_30 = arith.constant 0 : index
    %c0_31 = arith.constant 0 : index
    %45 = vector.load %arg12[%c0_30, %c0_31] : memref<8x32xf32, #tpu.memory_space<vmem>>, vector<8x32xf32>
    tpu.vector_store %arg12[%c0_30, %c0_31], %44 {strides = array<i32>} : memref<8x32xf32, #tpu.memory_space<vmem>>, vector<8x32xf32>,
    return
  }
  func.func @transform_0(%arg0: i32) -> (i32, i32) {
    %c0_i32 = arith.constant 0 : i32
    %c0_i32_0 = arith.constant 0 : i32
    return %arg0, %c0_i32 : i32, i32
  }
  func.func @transform_1(%arg0: i32) -> (i32, i32) {
    %c0_i32 = arith.constant 0 : i32
    %c0_i32_0 = arith.constant 0 : i32
    %c0_i32_1 = arith.constant 0 : i32
    return %c0_i32, %c0_i32_0 : i32, i32
  }
  func.func @transform_2(%arg0: i32) -> (i32, i32) {
    %c0_i32 = arith.constant 0 : i32
    %c0_i32_0 = arith.constant 0 : i32
    %c0_i32_1 = arith.constant 0 : i32
    return %c0_i32, %c0_i32_0 : i32, i32
  }
  func.func @transform_3(%arg0: i32) -> (i32, i32) {
    %c0_i32 = arith.constant 0 : i32
    %c0_i32_0 = arith.constant 0 : i32
    %c0_i32_1 = arith.constant 0 : i32
    return %c0_i32, %c0_i32_0 : i32, i32
  }
  func.func @transform_4(%arg0: i32) -> (i32, i32) {
    %c0_i32 = arith.constant 0 : i32
    %c0_i32_0 = arith.constant 0 : i32
    %c0_i32_1 = arith.constant 0 : i32
    return %c0_i32, %c0_i32_0 : i32, i32
  }
  func.func @transform_5(%arg0: i32) -> (i32, i32) {
    %c0_i32 = arith.constant 0 : i32
    %c0_i32_0 = arith.constant 0 : i32
    %c0_i32_1 = arith.constant 0 : i32
    return %c0_i32, %c0_i32_0 : i32, i32
  }
  func.func @transform_6(%arg0: i32) -> (i32, i32) {
    %c0_i32 = arith.constant 0 : i32
    %c0_i32_0 = arith.constant 0 : i32
    %c0_i32_1 = arith.constant 0 : i32
    return %c0_i32, %c0_i32_0 : i32, i32
  }
  func.func @transform_7(%arg0: i32) -> (i32, i32) {
    %c0_i32 = arith.constant 0 : i32
    %c0_i32_0 = arith.constant 0 : i32
    %c0_i32_1 = arith.constant 0 : i32
    return %c0_i32, %c0_i32_0 : i32, i32
  }
  func.func @transform_8(%arg0: i32) -> (i32, i32) {
    %c0_i32 = arith.constant 0 : i32
    %c0_i32_0 = arith.constant 0 : i32
    %c0_i32_1 = arith.constant 0 : i32
    return %c0_i32, %c0_i32_0 : i32, i32
  }
  func.func @transform_9(%arg0: i32) -> (i32, i32) {
    %c0_i32 = arith.constant 0 : i32
    %c0_i32_0 = arith.constant 0 : i32
    %c0_i32_1 = arith.constant 0 : i32
    return %c0_i32, %c0_i32_0 : i32, i32
  }
  func.func @transform_10(%arg0: i32) -> (i32, i32) {
    %c0_i32 = arith.constant 0 : i32
    %c0_i32_0 = arith.constant 0 : i32
    %c0_i32_1 = arith.constant 0 : i32
    return %c0_i32, %c0_i32_0 : i32, i32
  }
  func.func @transform_11(%arg0: i32) -> (i32, i32) {
    %c0_i32 = arith.constant 0 : i32
    %c0_i32_0 = arith.constant 0 : i32
    return %arg0, %c0_i32 : i32, i32
  }
}

</mosaic_0001>

<llo_original>
// kernel: tpu_custom_call.1
$region0: #{tpu_custom_call.1}
  #allocation0 [shape = 'u32[]', space=smem, size = 0x4, offset = 0x4, fixed_abs, tag = 'smem constant byte address 0x4 - core index']
  #allocation1 [shape = 'u32[72,128]{1,0:T(1,128)}', space=vmem, size = 0x9000, scoped, tag = 'internal scratch']
  %s0 = inlined_call_operand.hbm [shape: f32[16,16], index: 0, kind: input, shape index: {}]
  %s1 = inlined_call_operand.hbm [shape: bf16[16,16], index: 1, kind: input, shape index: {}]
  %s2 = inlined_call_operand.vmem [shape: f32[1,16], index: 2, kind: input, shape index: {}]
  %s3 = inlined_call_operand.hbm [shape: bf16[16,16], index: 3, kind: input, shape index: {}]
  %s4 = inlined_call_operand.vmem [shape: f32[1,16], index: 4, kind: input, shape index: {}]
  %s5 = inlined_call_operand.hbm [shape: bf16[16,64], index: 5, kind: input, shape index: {}]
  %s6 = inlined_call_operand.vmem [shape: f32[1,64], index: 6, kind: input, shape index: {}]
  %s7 = inlined_call_operand.hbm [shape: bf16[32,32], index: 7, kind: input, shape index: {}]
  %s8 = inlined_call_operand.vmem [shape: f32[1,32], index: 8, kind: input, shape index: {}]
  %s9 = inlined_call_operand.hbm [shape: bf16[32,32], index: 9, kind: input, shape index: {}]
  %s10 = inlined_call_operand.vmem [shape: f32[1,32], index: 10, kind: input, shape index: {}]
  %s11 = inlined_call_operand.hbm [shape: f32[16,32], index: 11, kind: output, shape index: {}]
  %s12 = sld [smem:[#allocation0]]
  $region101: #{tpu_custom_call.1} parent=0
    _
  %s14 = ssub.s32 1, %s12
  %s15 = scalar_select 0, %s14, %s12
  $region1: #{tpu_custom_call.1} parent=0
    #allocation2 [shape = 'u8[8192]{0}', space=vmem, size = 0x2000, scoped, tag = 'input window, operand 0']
    #allocation3 [shape = 's32[2]{0}', space=sflag, size = 0x8, scoped, tag = 'scoped memory for tpu_custom_call.1']
    #allocation4 [shape = 's32[2]{0}', space=sflag, size = 0x8, scoped, tag = 'scoped memory for tpu_custom_call.1']
    #allocation5 [shape = 'u8[4096]{0}', space=vmem, size = 0x1000, scoped, tag = 'input window, operand 1, single buffered']
    #allocation6 [shape = 's32[1]{0}', space=sflag, size = 0x4, scoped, tag = 'scoped memory for tpu_custom_call.1']
    #allocation7 [shape = 'u8[4096]{0}', space=vmem, size = 0x1000, scoped, tag = 'input window, operand 3, single buffered']
    #allocation8 [shape = 'u8[4096]{0}', space=vmem, size = 0x1000, scoped, tag = 'input window, operand 5, single buffered']
    #allocation9 [shape = 's32[1]{0}', space=sflag, size = 0x4, scoped, tag = 'scoped memory for tpu_custom_call.1']
    #allocation10 [shape = 'u8[8192]{0}', space=vmem, size = 0x2000, scoped, tag = 'input window, operand 7, single buffered']
    #allocation11 [shape = 'u8[8192]{0}', space=vmem, size = 0x2000, scoped, tag = 'input window, operand 9, single buffered']
    #allocation12 [shape = 's32[1]{0}', space=sflag, size = 0x4, scoped, tag = 'scoped memory for tpu_custom_call.1']
    #allocation13 [shape = 'u8[8192]{0}', space=vmem, size = 0x2000, scoped, tag = 'output window, operand 0']
    %16 = vsyncpa [#allocation3], 0
    %s17 = scalar_lea.sflag [#allocation3], 1
    %18 = vsyncpa %s17, 0
    %19 = vsyncpa [#allocation6], 0
    %20 = vsyncpa [#allocation9], 0
    %21 = vsyncpa [#allocation12], 0
    %22 = vsyncpa [#allocation4], 0
    %s23 = scalar_lea.sflag [#allocation4], 1
    %24 = vsyncpa %s23, 0
    loop: start=0, step=1, limit=4
    $region2: #{tpu_custom_call.1} parent=1 // loop_pre_header
      _
    $region3: #{tpu_custom_call.1} parent=1 // loop_header
      %s26 = sphi 0, %s30
      %p27 = scmp.ge.s32.totalorder %s26, 4
      %s36 = sphi 0, %s38
      %s39 = sphi 0, %s36
      %s40 = sphi 0, %s39
      %s56 = sphi 0, %s40
      %s60 = sphi 0, %s60
      %s62 = sphi 0, %s60
      %s63 = sphi 0, %s62
      %s77 = sphi 0, %s63
      %s81 = sphi 0, %s81
      %s83 = sphi 0, %s81
      %s84 = sphi 0, %s83
      %s98 = sphi 0, %s84
      %s102 = sphi 0, %s102
      %s104 = sphi 0, %s102
      %s105 = sphi 0, %s104
      %s119 = sphi 0, %s105
      %s123 = sphi 0, %s123
      %s125 = sphi 0, %s123
      %s126 = sphi 0, %s125
      %s140 = sphi 0, %s126
      %s144 = sphi 0, %s144
      %s146 = sphi 0, %s144
      %s147 = sphi 0, %s146
      %s161 = sphi 0, %s147
      %s165 = sphi 0, %s165
      %s167 = sphi 0, %s165
      %s168 = sphi 0, %s167
      %s182 = sphi 0, %s168
      %s186 = sphi 0, %s186
      %s188 = sphi 0, %s186
      %s189 = sphi 0, %s188
      %s203 = sphi 0, %s189
      %s207 = sphi 0, %s207
      %s209 = sphi 0, %s207
      %s210 = sphi 0, %s209
      %s224 = sphi 0, %s210
      %s228 = sphi 0, %s228
      %s230 = sphi 0, %s228
      %s231 = sphi 0, %s230
      %s245 = sphi 0, %s231
      %s249 = sphi 0, %s249
      %s251 = sphi 0, %s249
      %s252 = sphi 0, %s251
      %s266 = sphi 0, %s252
      %s272 = sphi 0, %s274
      %s275 = sphi 0, %s272
      %s276 = sphi 0, %s275
      %s292 = sphi 0, %s276
    $region4: #{tpu_custom_call.1} parent=1 // loop_header_branch
      %29 = sbr.rel (%p27) target = $region8
    $region5: #{tpu_custom_call.1} parent=1 // loop_body
      %s31 = ssub.s32 %s26, 1
      %s32 = ssub.s32 %s26, 2
      %s33 = sadd.s32 %s26, 1
      %s34 = ssub.s32 %s26, %s33
      %p35 = scmp.eq.s32.totalorder %s34, 0
      %s37 = sadd.s32 %s36, 1
      %s38 = scalar_select %p35, %s36, %s37
      %p41 = pneg %p35
      %p42 = scmp.eq.s32.totalorder %s26, 1
      %p43 = por %p41, %p42
      %p44 = scmp.ne.s32.totalorder %s36, %s39
      %p45 = scmp.eq.s32.totalorder %s26, 0
      %p46 = por %p44, %p45
      %p47 = scmp.ne.s32.totalorder %s36, %s39
      %p48 = scmp.eq.s32.totalorder %s31, 1
      %p49 = por %p47, %p48
      %p50 = scmp.ne.s32.totalorder %s39, %s40
      %p51 = scmp.eq.s32.totalorder %s31, 0
      %p52 = por %p50, %p51
      %p53 = scmp.ne.s32.totalorder %s39, %s40
      %p54 = scmp.eq.s32.totalorder %s32, 1
      %p55 = por %p53, %p54
      %p57 = scmp.ne.s32.totalorder %s40, %s56
      %p58 = scmp.eq.s32.totalorder %s32, 0
      %p59 = por %p57, %p58
      %s61 = sadd.s32 %s60, 1
      %p64 = scmp.eq.s32.totalorder %s26, 1
      %p65 = scmp.ne.s32.totalorder %s60, %s62
      %p66 = scmp.eq.s32.totalorder %s26, 0
      %p67 = por %p65, %p66
      %p68 = scmp.ne.s32.totalorder %s60, %s62
      %p69 = scmp.eq.s32.totalorder %s31, 1
      %p70 = por %p68, %p69
      %p71 = scmp.ne.s32.totalorder %s62, %s63
      %p72 = scmp.eq.s32.totalorder %s31, 0
      %p73 = por %p71, %p72
      %p74 = scmp.ne.s32.totalorder %s62, %s63
      %p75 = scmp.eq.s32.totalorder %s32, 1
      %p76 = por %p74, %p75
      %p78 = scmp.ne.s32.totalorder %s63, %s77
      %p79 = scmp.eq.s32.totalorder %s32, 0
      %p80 = por %p78, %p79
      %s82 = sadd.s32 %s81, 1
      %p85 = scmp.eq.s32.totalorder %s26, 1
      %p86 = scmp.ne.s32.totalorder %s81, %s83
      %p87 = scmp.eq.s32.totalorder %s26, 0
      %p88 = por %p86, %p87
      %p89 = scmp.ne.s32.totalorder %s81, %s83
      %p90 = scmp.eq.s32.totalorder %s31, 1
      %p91 = por %p89, %p90
      %p92 = scmp.ne.s32.totalorder %s83, %s84
      %p93 = scmp.eq.s32.totalorder %s31, 0
      %p94 = por %p92, %p93
      %p95 = scmp.ne.s32.totalorder %s83, %s84
      %p96 = scmp.eq.s32.totalorder %s32, 1
      %p97 = por %p95, %p96
      %p99 = scmp.ne.s32.totalorder %s84, %s98
      %p100 = scmp.eq.s32.totalorder %s32, 0
      %p101 = por %p99, %p100
      %s103 = sadd.s32 %s102, 1
      %p106 = scmp.eq.s32.totalorder %s26, 1
      %p107 = scmp.ne.s32.totalorder %s102, %s104
      %p108 = scmp.eq.s32.totalorder %s26, 0
      %p109 = por %p107, %p108
      %p110 = scmp.ne.s32.totalorder %s102, %s104
      %p111 = scmp.eq.s32.totalorder %s31, 1
      %p112 = por %p110, %p111
      %p113 = scmp.ne.s32.totalorder %s104, %s105
      %p114 = scmp.eq.s32.totalorder %s31, 0
      %p115 = por %p113, %p114
      %p116 = scmp.ne.s32.totalorder %s104, %s105
      %p117 = scmp.eq.s32.totalorder %s32, 1
      %p118 = por %p116, %p117
      %p120 = scmp.ne.s32.totalorder %s105, %s119
      %p121 = scmp.eq.s32.totalorder %s32, 0
      %p122 = por %p120, %p121
      %s124 = sadd.s32 %s123, 1
      %p127 = scmp.eq.s32.totalorder %s26, 1
      %p128 = scmp.ne.s32.totalorder %s123, %s125
      %p129 = scmp.eq.s32.totalorder %s26, 0
      %p130 = por %p128, %p129
      %p131 = scmp.ne.s32.totalorder %s123, %s125
      %p132 = scmp.eq.s32.totalorder %s31, 1
      %p133 = por %p131, %p132
      %p134 = scmp.ne.s32.totalorder %s125, %s126
      %p135 = scmp.eq.s32.totalorder %s31, 0
      %p136 = por %p134, %p135
      %p137 = scmp.ne.s32.totalorder %s125, %s126
      %p138 = scmp.eq.s32.totalorder %s32, 1
      %p139 = por %p137, %p138
      %p141 = scmp.ne.s32.totalorder %s126, %s140
      %p142 = scmp.eq.s32.totalorder %s32, 0
      %p143 = por %p141, %p142
      %s145 = sadd.s32 %s144, 1
      %p148 = scmp.eq.s32.totalorder %s26, 1
      %p149 = scmp.ne.s32.totalorder %s144, %s146
      %p150 = scmp.eq.s32.totalorder %s26, 0
      %p151 = por %p149, %p150
      %p152 = scmp.ne.s32.totalorder %s144, %s146
      %p153 = scmp.eq.s32.totalorder %s31, 1
      %p154 = por %p152, %p153
      %p155 = scmp.ne.s32.totalorder %s146, %s147
      %p156 = scmp.eq.s32.totalorder %s31, 0
      %p157 = por %p155, %p156
      %p158 = scmp.ne.s32.totalorder %s146, %s147
      %p159 = scmp.eq.s32.totalorder %s32, 1
      %p160 = por %p158, %p159
      %p162 = scmp.ne.s32.totalorder %s147, %s161
      %p163 = scmp.eq.s32.totalorder %s32, 0
      %p164 = por %p162, %p163
      %s166 = sadd.s32 %s165, 1
      %p169 = scmp.eq.s32.totalorder %s26, 1
      %p170 = scmp.ne.s32.totalorder %s165, %s167
      %p171 = scmp.eq.s32.totalorder %s26, 0
      %p172 = por %p170, %p171
      %p173 = scmp.ne.s32.totalorder %s165, %s167
      %p174 = scmp.eq.s32.totalorder %s31, 1
      %p175 = por %p173, %p174
      %p176 = scmp.ne.s32.totalorder %s167, %s168
      %p177 = scmp.eq.s32.totalorder %s31, 0
      %p178 = por %p176, %p177
      %p179 = scmp.ne.s32.totalorder %s167, %s168
      %p180 = scmp.eq.s32.totalorder %s32, 1
      %p181 = por %p179, %p180
      %p183 = scmp.ne.s32.totalorder %s168, %s182
      %p184 = scmp.eq.s32.totalorder %s32, 0
      %p185 = por %p183, %p184
      %s187 = sadd.s32 %s186, 1
      %p190 = scmp.eq.s32.totalorder %s26, 1
      %p191 = scmp.ne.s32.totalorder %s186, %s188
      %p192 = scmp.eq.s32.totalorder %s26, 0
      %p193 = por %p191, %p192
      %p194 = scmp.ne.s32.totalorder %s186, %s188
      %p195 = scmp.eq.s32.totalorder %s31, 1
      %p196 = por %p194, %p195
      %p197 = scmp.ne.s32.totalorder %s188, %s189
      %p198 = scmp.eq.s32.totalorder %s31, 0
      %p199 = por %p197, %p198
      %p200 = scmp.ne.s32.totalorder %s188, %s189
      %p201 = scmp.eq.s32.totalorder %s32, 1
      %p202 = por %p200, %p201
      %p204 = scmp.ne.s32.totalorder %s189, %s203
      %p205 = scmp.eq.s32.totalorder %s32, 0
      %p206 = por %p204, %p205
      %s208 = sadd.s32 %s207, 1
      %p211 = scmp.eq.s32.totalorder %s26, 1
      %p212 = scmp.ne.s32.totalorder %s207, %s209
      %p213 = scmp.eq.s32.totalorder %s26, 0
      %p214 = por %p212, %p213
      %p215 = scmp.ne.s32.totalorder %s207, %s209
      %p216 = scmp.eq.s32.totalorder %s31, 1
      %p217 = por %p215, %p216
      %p218 = scmp.ne.s32.totalorder %s209, %s210
      %p219 = scmp.eq.s32.totalorder %s31, 0
      %p220 = por %p218, %p219
      %p221 = scmp.ne.s32.totalorder %s209, %s210
      %p222 = scmp.eq.s32.totalorder %s32, 1
      %p223 = por %p221, %p222
      %p225 = scmp.ne.s32.totalorder %s210, %s224
      %p226 = scmp.eq.s32.totalorder %s32, 0
      %p227 = por %p225, %p226
      %s229 = sadd.s32 %s228, 1
      %p232 = scmp.eq.s32.totalorder %s26, 1
      %p233 = scmp.ne.s32.totalorder %s228, %s230
      %p234 = scmp.eq.s32.totalorder %s26, 0
      %p235 = por %p233, %p234
      %p236 = scmp.ne.s32.totalorder %s228, %s230
      %p237 = scmp.eq.s32.totalorder %s31, 1
      %p238 = por %p236, %p237
      %p239 = scmp.ne.s32.totalorder %s230, %s231
      %p240 = scmp.eq.s32.totalorder %s31, 0
      %p241 = por %p239, %p240
      %p242 = scmp.ne.s32.totalorder %s230, %s231
      %p243 = scmp.eq.s32.totalorder %s32, 1
      %p244 = por %p242, %p243
      %p246 = scmp.ne.s32.totalorder %s231, %s245
      %p247 = scmp.eq.s32.totalorder %s32, 0
      %p248 = por %p246, %p247
      %s250 = sadd.s32 %s249, 1
      %p253 = scmp.eq.s32.totalorder %s26, 1
      %p254 = scmp.ne.s32.totalorder %s249, %s251
      %p255 = scmp.eq.s32.totalorder %s26, 0
      %p256 = por %p254, %p255
      %p257 = scmp.ne.s32.totalorder %s249, %s251
      %p258 = scmp.eq.s32.totalorder %s31, 1
      %p259 = por %p257, %p258
      %p260 = scmp.ne.s32.totalorder %s251, %s252
      %p261 = scmp.eq.s32.totalorder %s31, 0
      %p262 = por %p260, %p261
      %p263 = scmp.ne.s32.totalorder %s251, %s252
      %p264 = scmp.eq.s32.totalorder %s32, 1
      %p265 = por %p263, %p264
      %p267 = scmp.ne.s32.totalorder %s252, %s266
      %p268 = scmp.eq.s32.totalorder %s32, 0
      %p269 = por %p267, %p268
      %s270 = ssub.s32 %s26, %s33
      %p271 = scmp.eq.s32.totalorder %s270, 0
      %s273 = sadd.s32 %s272, 1
      %s274 = scalar_select %p271, %s272, %s273
      %p277 = pneg %p271
      %p278 = scmp.eq.s32.totalorder %s26, 1
      %p279 = por %p277, %p278
      %p280 = scmp.ne.s32.totalorder %s272, %s275
      %p281 = scmp.eq.s32.totalorder %s26, 0
      %p282 = por %p280, %p281
      %p283 = scmp.ne.s32.totalorder %s272, %s275
      %p284 = scmp.eq.s32.totalorder %s31, 1
      %p285 = por %p283, %p284
      %p286 = scmp.ne.s32.totalorder %s275, %s276
      %p287 = scmp.eq.s32.totalorder %s31, 0
      %p288 = por %p286, %p287
      %p289 = scmp.ne.s32.totalorder %s275, %s276
      %p290 = scmp.eq.s32.totalorder %s32, 1
      %p291 = por %p289, %p290
      %p293 = scmp.ne.s32.totalorder %s276, %s292
      %p294 = scmp.eq.s32.totalorder %s32, 0
      %p295 = por %p293, %p294
      %p296 = scmp.le.s32.totalorder 1, %s26
      %p297 = scmp.lt.s32.totalorder %s26, 3
      %p298 = pnand %p296, %p297
      %p299 = pneg %p298
      // Predicated region
      $region9: #{tpu_custom_call.1} parent=5 // pred_check
        _
      $region10: #{tpu_custom_call.1} parent=5 // pred_check_branch
        %301 = sbr.rel (%p298) target = $region12
      $region11: #{tpu_custom_call.1} parent=5 // pred_region
        %s302 = ssub.s32 %s26, 1
        // Predicated region
        $region13: #{tpu_custom_call.1} parent=11 // pred_check
          %p303 = pneg %p73
        $region14: #{tpu_custom_call.1} parent=11 // pred_check_branch
          %305 = sbr.rel (%p303) target = $region16
        $region15: #{tpu_custom_call.1} parent=11 // pred_region
          %307 = vsyncadd [#allocation6], 0
          %s308 = sshll.u32 %s1, 4
          %s309 = int_to_ptr.hbm [resolvable:$true] %s308
          %s310 = sshll.u32 [#allocation5], 4
          %s311 = int_to_ptr.vmem [resolvable:$true] %s310
          %316 = dma.hbm_to_vmem [thread:$0]  %s309, 128, %s311, [#allocation6], 64, 64, 4
        $region16: #{tpu_custom_call.1} parent=11 // pred_fallthru
          _
        // Predicated region
        $region17: #{tpu_custom_call.1} parent=11 // pred_check
          %p317 = pneg %p94
        $region18: #{tpu_custom_call.1} parent=11 // pred_check_branch
          %319 = sbr.rel (%p317) target = $region20
        $region19: #{tpu_custom_call.1} parent=11 // pred_region
          _
        $region20: #{tpu_custom_call.1} parent=11 // pred_fallthru
          _
        // Predicated region
        $region21: #{tpu_custom_call.1} parent=11 // pred_check
          %p320 = pneg %p115
        $region22: #{tpu_custom_call.1} parent=11 // pred_check_branch
          %322 = sbr.rel (%p320) target = $region24
        $region23: #{tpu_custom_call.1} parent=11 // pred_region
          %324 = vsyncadd [#allocation6], 0
          %s325 = sshll.u32 %s3, 4
          %s326 = int_to_ptr.hbm [resolvable:$true] %s325
          %s327 = sshll.u32 [#allocation7], 4
          %s328 = int_to_ptr.vmem [resolvable:$true] %s327
          %333 = dma.hbm_to_vmem [thread:$0]  %s326, 128, %s328, [#allocation6], 64, 64, 4
        $region24: #{tpu_custom_call.1} parent=11 // pred_fallthru
          _
        // Predicated region
        $region25: #{tpu_custom_call.1} parent=11 // pred_check
          %p334 = pneg %p136
        $region26: #{tpu_custom_call.1} parent=11 // pred_check_branch
          %336 = sbr.rel (%p334) target = $region28
        $region27: #{tpu_custom_call.1} parent=11 // pred_region
          _
        $region28: #{tpu_custom_call.1} parent=11 // pred_fallthru
          _
        // Predicated region
        $region29: #{tpu_custom_call.1} parent=11 // pred_check
          %p337 = pneg %p157
        $region30: #{tpu_custom_call.1} parent=11 // pred_check_branch
          %339 = sbr.rel (%p337) target = $region32
        $region31: #{tpu_custom_call.1} parent=11 // pred_region
          %341 = vsyncadd [#allocation9], 0
          %s342 = sshll.u32 %s5, 4
          %s343 = int_to_ptr.hbm [resolvable:$true] %s342
          %s344 = sshll.u32 [#allocation8], 4
          %s345 = int_to_ptr.vmem [resolvable:$true] %s344
          %350 = dma.hbm_to_vmem [thread:$0]  %s343, 128, %s345, [#allocation9], 64, 64, 4
        $region32: #{tpu_custom_call.1} parent=11 // pred_fallthru
          _
        // Predicated region
        $region33: #{tpu_custom_call.1} parent=11 // pred_check
          %p351 = pneg %p178
        $region34: #{tpu_custom_call.1} parent=11 // pred_check_branch
          %353 = sbr.rel (%p351) target = $region36
        $region35: #{tpu_custom_call.1} parent=11 // pred_region
          _
        $region36: #{tpu_custom_call.1} parent=11 // pred_fallthru
          _
        // Predicated region
        $region37: #{tpu_custom_call.1} parent=11 // pred_check
          %p354 = pneg %p199
        $region38: #{tpu_custom_call.1} parent=11 // pred_check_branch
          %356 = sbr.rel (%p354) target = $region40
        $region39: #{tpu_custom_call.1} parent=11 // pred_region
          %358 = vsyncadd [#allocation9], 0
          %s359 = sshll.u32 %s7, 4
          %s360 = int_to_ptr.hbm [resolvable:$true] %s359
          %s361 = sshll.u32 [#allocation10], 4
          %s362 = int_to_ptr.vmem [resolvable:$true] %s361
          %367 = dma.hbm_to_vmem [thread:$0]  %s360, 256, %s362, [#allocation9], 64, 64, 4
        $region40: #{tpu_custom_call.1} parent=11 // pred_fallthru
          _
        // Predicated region
        $region41: #{tpu_custom_call.1} parent=11 // pred_check
          %p368 = pneg %p220
        $region42: #{tpu_custom_call.1} parent=11 // pred_check_branch
          %370 = sbr.rel (%p368) target = $region44
        $region43: #{tpu_custom_call.1} parent=11 // pred_region
          _
        $region44: #{tpu_custom_call.1} parent=11 // pred_fallthru
          _
        // Predicated region
        $region45: #{tpu_custom_call.1} parent=11 // pred_check
          %p371 = pneg %p241
        $region46: #{tpu_custom_call.1} parent=11 // pred_check_branch
          %373 = sbr.rel (%p371) target = $region48
        $region47: #{tpu_custom_call.1} parent=11 // pred_region
          %375 = vsyncadd [#allocation12], 0
          %s376 = sshll.u32 %s9, 4
          %s377 = int_to_ptr.hbm [resolvable:$true] %s376
          %s378 = sshll.u32 [#allocation11], 4
          %s379 = int_to_ptr.vmem [resolvable:$true] %s378
          %384 = dma.hbm_to_vmem [thread:$0]  %s377, 256, %s379, [#allocation12], 64, 64, 4
        $region48: #{tpu_custom_call.1} parent=11 // pred_fallthru
          _
        // Predicated region
        $region49: #{tpu_custom_call.1} parent=11 // pred_check
          %p385 = pneg %p262
        $region50: #{tpu_custom_call.1} parent=11 // pred_check_branch
          %387 = sbr.rel (%p385) target = $region52
        $region51: #{tpu_custom_call.1} parent=11 // pred_region
          _
        $region52: #{tpu_custom_call.1} parent=11 // pred_fallthru
          _
      $region12: #{tpu_custom_call.1} parent=5 // pred_fallthru
        _
      %p388 = scmp.lt.s32.totalorder %s26, 2
      // Predicated region
      $region53: #{tpu_custom_call.1} parent=5 // pred_check
        %p389 = pneg %p388
      $region54: #{tpu_custom_call.1} parent=5 // pred_check_branch
        %391 = sbr.rel (%p389) target = $region56
      $region55: #{tpu_custom_call.1} parent=5 // pred_region
        // Predicated region
        $region57: #{tpu_custom_call.1} parent=55 // pred_check
          %p392 = pneg %p46
        $region58: #{tpu_custom_call.1} parent=55 // pred_check_branch
          %394 = sbr.rel (%p392) target = $region60
        $region59: #{tpu_custom_call.1} parent=55 // pred_region
          %s395 = sand.u32 %s36, 1
          %s396 = scalar_lea.sflag [#allocation3], %s395
          %s397 = sand.u32 %s36, 1
          %s398 = smul.addr %s397, 8
          %s399 = scalar_lea.vmem [#allocation2], %s398
          %401 = vsyncadd %s396, 0
          %s402 = smul.addr %s26, 8
          %s403 = scalar_lea.hbm %s0, %s402
          %s405 = sshll.u32 %s403, 4
          %s406 = int_to_ptr.hbm [resolvable:$true] %s405
          %s407 = sshll.u32 %s399, 4
          %s408 = int_to_ptr.vmem [resolvable:$true] %s407
          %410 = dma.hbm_to_vmem [thread:$0]  %s406, 128, %s408, %s396
        $region60: #{tpu_custom_call.1} parent=55 // pred_fallthru
          _
      $region56: #{tpu_custom_call.1} parent=5 // pred_fallthru
        _
      %p411 = scmp.le.s32.totalorder 1, %s26
      %p412 = scmp.lt.s32.totalorder %s26, 3
      %p413 = pnand %p411, %p412
      %p414 = pneg %p413
      // Predicated region
      $region61: #{tpu_custom_call.1} parent=5 // pred_check
        _
      $region62: #{tpu_custom_call.1} parent=5 // pred_check_branch
        %416 = sbr.rel (%p413) target = $region64
      $region63: #{tpu_custom_call.1} parent=5 // pred_region
        %s417 = ssub.s32 %s26, 1
        %s418 = sand.u32 %s39, 1
        %s419 = scalar_lea.sflag [#allocation3], %s418
        %s420 = sand.u32 %s39, 1
        %s421 = smul.addr %s420, 8
        %s422 = scalar_lea.vmem [#allocation2], %s421
        // Predicated region
        $region65: #{tpu_custom_call.1} parent=63 // pred_check
          %p423 = pneg %p52
        $region66: #{tpu_custom_call.1} parent=63 // pred_check_branch
          %425 = sbr.rel (%p423) target = $region68
        $region67: #{tpu_custom_call.1} parent=63 // pred_region
          %427 = dma.done %s419, 128
        $region68: #{tpu_custom_call.1} parent=63 // pred_fallthru
          _
        // Predicated region
        $region69: #{tpu_custom_call.1} parent=63 // pred_check
          %p428 = pneg %p73
        $region70: #{tpu_custom_call.1} parent=63 // pred_check_branch
          %430 = sbr.rel (%p428) target = $region72
        $region71: #{tpu_custom_call.1} parent=63 // pred_region
          %432 = dma.done [#allocation6], 128
        $region72: #{tpu_custom_call.1} parent=63 // pred_fallthru
          _
        // Predicated region
        $region73: #{tpu_custom_call.1} parent=63 // pred_check
          %p433 = pneg %p115
        $region74: #{tpu_custom_call.1} parent=63 // pred_check_branch
          %435 = sbr.rel (%p433) target = $region76
        $region75: #{tpu_custom_call.1} parent=63 // pred_region
          %437 = dma.done [#allocation6], 128
        $region76: #{tpu_custom_call.1} parent=63 // pred_fallthru
          _
        // Predicated region
        $region77: #{tpu_custom_call.1} parent=63 // pred_check
          %p438 = pneg %p157
        $region78: #{tpu_custom_call.1} parent=63 // pred_check_branch
          %440 = sbr.rel (%p438) target = $region80
        $region79: #{tpu_custom_call.1} parent=63 // pred_region
          %442 = dma.done [#allocation9], 128
        $region80: #{tpu_custom_call.1} parent=63 // pred_fallthru
          _
        // Predicated region
        $region81: #{tpu_custom_call.1} parent=63 // pred_check
          %p443 = pneg %p199
        $region82: #{tpu_custom_call.1} parent=63 // pred_check_branch
          %445 = sbr.rel (%p443) target = $region84
        $region83: #{tpu_custom_call.1} parent=63 // pred_region
          %447 = dma.done [#allocation9], 256
        $region84: #{tpu_custom_call.1} parent=63 // pred_fallthru
          _
        // Predicated region
        $region85: #{tpu_custom_call.1} parent=63 // pred_check
          %p448 = pneg %p241
        $region86: #{tpu_custom_call.1} parent=63 // pred_check_branch
          %450 = sbr.rel (%p448) target = $region88
        $region87: #{tpu_custom_call.1} parent=63 // pred_region
          %452 = dma.done [#allocation12], 256
        $region88: #{tpu_custom_call.1} parent=63 // pred_fallthru
          _
        %s453 = sand.u32 %s39, 1
        %s454 = scalar_lea.sflag [#allocation3], %s453
        %s455 = sand.u32 %s39, 1
        %s456 = smul.addr %s455, 8
        %s457 = scalar_lea.vmem [#allocation2], %s456
        %p458 = pneg %p52
        %p459 = pneg %p49
        %p460 = pneg %p73
        %p461 = pneg %p70
        %p462 = pneg %p94
        %p463 = pneg %p91
        %p464 = pneg %p115
        %p465 = pneg %p112
        %p466 = pneg %p136
        %p467 = pneg %p133
        %p468 = pneg %p157
        %p469 = pneg %p154
        %p470 = pneg %p178
        %p471 = pneg %p175
        %p472 = pneg %p199
        %p473 = pneg %p196
        %p474 = pneg %p220
        %p475 = pneg %p217
        %p476 = pneg %p241
        %p477 = pneg %p238
        %p478 = pneg %p262
        %p479 = pneg %p259
        %p480 = pneg %p288
        %p481 = pneg %p285
        %s482 = sand.u32 %s275, 1
        %s483 = scalar_lea.sflag [#allocation4], %s482
        %s484 = sand.u32 %s275, 1
        %s485 = smul.addr %s484, 8
        %s486 = scalar_lea.vmem [#allocation13], %s485
        %v488 = vld [vmem:[%s422] sm:$0xff]
        %v489 = vpack.c.bf16 %v488, %v488
        %v490 = vld [vmem:[#allocation5] sm:$0xf]
        %v491 = vld [vmem:[#allocation5 + $0x4] sm:$0xf]
        %v492 = vld [vmem:[%s2] sm:$0x1]
        %v494 = vperm.slane %v492, 0
        %v498 = vunpack.c.l.b16 %v490
        %v499 = vunpack.c.l.b16 %v491
        %v500 = vpack.c.b16 %v499, %v498
        %vm502 = vcmask 130048
        %v504 = vsel %vm502, %v489, 0
        %506 = vmatpush.bf16.msra.mxu0 0
        %507 = vmatpush.bf16.msra.mxu0 0
        %508 = vmatpush.bf16.msra.mxu0 0
        %509 = vmatpush.bf16.msra.mxu0 0
        %510 = vmatpush.bf16.msra.mxu0 0
        %511 = vmatpush.bf16.msra.mxu0 0
        %512 = vmatpush.bf16.msra.mxu0 0
        %513 = vmatpush.bf16.msra.mxu0 %v500
        %514 = vmatmul.bf16.gmra.mxu0 %v504
        %v515 = vpop.f32.mrf.mxu0
        %v516 = vadd.f32 %v494, %v515
        %v517 = vpop.f32.mrf.mxu0
        %518 = vdwg.mxu0
        %v519 = vmax.f32 %v516, 0.0
        %v520 = vpack.c.bf16 %v519, %v519
        %v521 = vld [vmem:[#allocation7] sm:$0xf]
        %v522 = vld [vmem:[#allocation7 + $0x4] sm:$0xf]
        %v523 = vld [vmem:[%s4] sm:$0x1]
        %v525 = vperm.slane %v523, 0
        %v529 = vunpack.c.l.b16 %v521
        %v530 = vunpack.c.l.b16 %v522
        %v531 = vpack.c.b16 %v530, %v529
        %v534 = vsel %vm502, %v520, 0
        %536 = vmatpush.bf16.msra.mxu0 0
        %537 = vmatpush.bf16.msra.mxu0 0
        %538 = vmatpush.bf16.msra.mxu0 0
        %539 = vmatpush.bf16.msra.mxu0 0
        %540 = vmatpush.bf16.msra.mxu0 0
        %541 = vmatpush.bf16.msra.mxu0 0
        %542 = vmatpush.bf16.msra.mxu0 0
        %543 = vmatpush.bf16.msra.mxu0 %v531
        %544 = vmatmul.bf16.gmra.mxu0 %v534
        %v545 = vpop.f32.mrf.mxu0
        %v546 = vadd.f32 %v525, %v545
        %v547 = vpop.f32.mrf.mxu0
        %548 = vdwg.mxu0
        %v549 = vadd.f32 %v546, %v488
        %v550 = vmax.f32 %v549, 0.0
        %v551 = vpack.c.bf16 %v550, %v550
        %v552 = vld [vmem:[#allocation8] sm:$0xf]
        %v553 = vld [vmem:[#allocation8 + $0x4] sm:$0xf]
        %v554 = vld [vmem:[%s6] sm:$0x1]
        %v556 = vperm.slane %v554, 0
        %v560 = vunpack.c.l.b16 %v552
        %v561 = vunpack.c.l.b16 %v553
        %v562 = vpack.c.b16 %v561, %v560
        %v565 = vsel %vm502, %v551, 0
        %567 = vmatpush.bf16.msra.mxu0 0
        %568 = vmatpush.bf16.msra.mxu0 0
        %569 = vmatpush.bf16.msra.mxu0 0
        %570 = vmatpush.bf16.msra.mxu0 0
        %571 = vmatpush.bf16.msra.mxu0 0
        %572 = vmatpush.bf16.msra.mxu0 0
        %573 = vmatpush.bf16.msra.mxu0 0
        %574 = vmatpush.bf16.msra.mxu0 %v562
        %575 = vmatmul.bf16.gmra.mxu0 %v565
        %v576 = vpop.f32.mrf.mxu0
        %v577 = vadd.f32 %v556, %v576
        %v578 = vpop.f32.mrf.mxu0
        %579 = vdwg.mxu0
        %v580 = vmax.f32 %v577, 0.0
        %v581 = vpack.c.bf16 %v580, %v580
        %v582 = vld [vmem:[#allocation10] sm:$0xf]
        %v583 = vld [vmem:[#allocation10 + $0x4] sm:$0xf]
        %v584 = vld [vmem:[#allocation10 + $0x8] sm:$0xf]
        %v585 = vld [vmem:[#allocation10 + $0xc] sm:$0xf]
        %v586 = vld [vmem:[%s8] sm:$0x1]
        %v588 = vperm.slane %v586, 0
        %v594 = vunpack.c.l.b16 %v582
        %v595 = vunpack.c.l.b16 %v583
        %v596 = vunpack.c.l.b16 %v584
        %v597 = vunpack.c.l.b16 %v585
        %v598 = vpack.c.b16 %v595, %v594
        %v599 = vpack.c.b16 %v597, %v596
        %vm602 = vcmask 261120
        %v604 = vsel %vm602, %v581, 0
        %606 = vmatpush.bf16.msra.mxu0 0
        %607 = vmatpush.bf16.msra.mxu0 0
        %608 = vmatpush.bf16.msra.mxu0 0
        %609 = vmatpush.bf16.msra.mxu0 0
        %610 = vmatpush.bf16.msra.mxu0 0
        %611 = vmatpush.bf16.msra.mxu0 0
        %612 = vmatpush.bf16.msra.mxu0 %v599
        %613 = vmatpush.bf16.msra.mxu0 %v598
        %614 = vmatmul.bf16.gmra.mxu0 %v604
        %v615 = vpop.f32.mrf.mxu0
        %v616 = vadd.f32 %v588, %v615
        %v617 = vpop.f32.mrf.mxu0
        %618 = vdwg.mxu0
        %620 = vrot.lane.b32.xlu0 %v577, 96
        %v621 = vpop.permute.xlu0 %620
        %v623 = vadd.f32 %v616, %v621
        %v624 = vmax.f32 %v623, 0.0
        %v625 = vpack.c.bf16 %v624, %v624
        %v626 = vld [vmem:[#allocation11] sm:$0xf]
        %v627 = vld [vmem:[#allocation11 + $0x4] sm:$0xf]
        %v628 = vld [vmem:[#allocation11 + $0x8] sm:$0xf]
        %v629 = vld [vmem:[#allocation11 + $0xc] sm:$0xf]
        %v630 = vld [vmem:[%s10] sm:$0x1]
        %v632 = vperm.slane %v630, 0
        %v638 = vunpack.c.l.b16 %v626
        %v639 = vunpack.c.l.b16 %v627
        %v640 = vunpack.c.l.b16 %v628
        %v641 = vunpack.c.l.b16 %v629
        %v642 = vpack.c.b16 %v639, %v638
        %v643 = vpack.c.b16 %v641, %v640
        %v647 = vsel %vm602, %v625, 0
        %649 = vmatpush.bf16.msra.mxu0 0
        %650 = vmatpush.bf16.msra.mxu0 0
        %651 = vmatpush.bf16.msra.mxu0 0
        %652 = vmatpush.bf16.msra.mxu0 0
        %653 = vmatpush.bf16.msra.mxu0 0
        %654 = vmatpush.bf16.msra.mxu0 0
        %655 = vmatpush.bf16.msra.mxu0 %v643
        %656 = vmatpush.bf16.msra.mxu0 %v642
        %657 = vmatmul.bf16.gmra.mxu0 %v647
        %v658 = vpop.f32.mrf.mxu0
        %v659 = vadd.f32 %v632, %v658
        %v660 = vpop.f32.mrf.mxu0
        %661 = vdwg.mxu0
        %v662 = vmax.f32 %v659, 0.0
        %663 = vst.msk [vmem:[%s486] sm:$0xff] %vm602, %v662
        %s664 = sand.u32 %s275, 1
        %s665 = scalar_lea.sflag [#allocation4], %s664
        %s666 = sand.u32 %s275, 1
        %s667 = smul.addr %s666, 8
        %s668 = scalar_lea.vmem [#allocation13], %s667
        // Predicated region
        $region89: #{tpu_custom_call.1} parent=63 // pred_check
          %p669 = pneg %p285
        $region90: #{tpu_custom_call.1} parent=63 // pred_check_branch
          %671 = sbr.rel (%p669) target = $region92
        $region91: #{tpu_custom_call.1} parent=63 // pred_region
          %673 = vsyncadd %s665, 0
          %s674 = smul.addr %s31, 8
          %s675 = scalar_lea.hbm %s11, %s674
          %s677 = sshll.u32 %s668, 4
          %s678 = int_to_ptr.vmem [resolvable:$true] %s677
          %s679 = sshll.u32 %s675, 4
          %s680 = int_to_ptr.hbm [resolvable:$true] %s679
          %682 = dma.vmem_to_hbm [thread:$0]  %s678, 128, %s680, %s665
        $region92: #{tpu_custom_call.1} parent=63 // pred_fallthru
          _
      $region64: #{tpu_custom_call.1} parent=5 // pred_fallthru
        _
      %p683 = scmp.le.s32.totalorder 2, %s26
      // Predicated region
      $region93: #{tpu_custom_call.1} parent=5 // pred_check
        %p684 = pneg %p683
      $region94: #{tpu_custom_call.1} parent=5 // pred_check_branch
        %686 = sbr.rel (%p684) target = $region96
      $region95: #{tpu_custom_call.1} parent=5 // pred_region
        %s687 = ssub.s32 %s26, 2
        // Predicated region
        $region97: #{tpu_custom_call.1} parent=95 // pred_check
          %p688 = pneg %p291
        $region98: #{tpu_custom_call.1} parent=95 // pred_check_branch
          %690 = sbr.rel (%p688) target = $region100
        $region99: #{tpu_custom_call.1} parent=95 // pred_region
          %s691 = sand.u32 %s276, 1
          %s692 = scalar_lea.sflag [#allocation4], %s691
          %s693 = sand.u32 %s276, 1
          %s694 = smul.addr %s693, 8
          %s695 = scalar_lea.vmem [#allocation13], %s694
          %697 = dma.done %s692, 128
        $region100: #{tpu_custom_call.1} parent=95 // pred_fallthru
          _
      $region96: #{tpu_custom_call.1} parent=5 // pred_fallthru
        _
    $region6: #{tpu_custom_call.1} parent=1 // loop_footer
      %s30 = sadd.s32 1, %s26
    $region7: #{tpu_custom_call.1} parent=1 // loop_footer_branch
      %25 = sbr.rel target = $region3
    $region8: #{tpu_custom_call.1} parent=1 // loop_exit
      _
    %698 = vsyncpa [#allocation3], 1
    %s699 = scalar_lea.sflag [#allocation3], 1
    %700 = vsyncpa %s699, 1
    %701 = vsyncpa [#allocation6], 1
    %702 = vsyncpa [#allocation9], 1
    %703 = vsyncpa [#allocation12], 1
    %704 = vsyncpa [#allocation4], 1
    %s705 = scalar_lea.sflag [#allocation4], 1
    %706 = vsyncpa %s705, 1

</llo_original>
